<compile_context>
chip_gen: v5e
topology: v5e:2x2
jax: 0.10.0
libtpu: 0.0.40
codegen_flags: <defaults>
</compile_context>

<pallas_src>
import math
from functools import partial

import jax
import jax.numpy as jnp
from jax.experimental import pallas as pl
from jax.experimental.pallas import tpu as pltpu


# ------------------------------ kernels ------------------------------------ #

def _mlp3_kernel(x_ref, w1_ref, b1_ref, w2_ref, b2_ref, w3_ref, b3_ref, out_ref):
    """Plain 3-layer MLP head: out = relu(relu(x@W1+b1)@W2+b2)@W3 + b3."""
    h = jnp.maximum(
        jnp.dot(x_ref[...], w1_ref[...], preferred_element_type=jnp.float32)
        + b1_ref[...], 0.0)
    h = jnp.maximum(
        jnp.dot(h, w2_ref[...], preferred_element_type=jnp.float32)
        + b2_ref[...], 0.0)
    y = jnp.dot(h, w3_ref[...], preferred_element_type=jnp.float32) + b3_ref[...]
    out_ref[...] = y.astype(out_ref.dtype)


def _dueling_kernel(num_actions, x_ref, w1_ref, b1_ref, w2_ref, b2_ref,
                    w3_ref, b3_ref, out_ref):
    """Fused dueling head: both streams through 3 matmuls (pre-fused weights).

    Head output columns: [0, A) = advantage, column A = value.
    Q = V + A - mean_a(A)   (implicit broadcasting; no broadcast_to).
    """
    h = jnp.maximum(
        jnp.dot(x_ref[...], w1_ref[...], preferred_element_type=jnp.float32)
        + b1_ref[...], 0.0)
    h = jnp.maximum(
        jnp.dot(h, w2_ref[...], preferred_element_type=jnp.float32)
        + b2_ref[...], 0.0)
    y = jnp.dot(h, w3_ref[...], preferred_element_type=jnp.float32) + b3_ref[...]
    adv = y[:, :num_actions]                    # [TB, A]   (lane-0-aligned slice)
    val = y[:, num_actions:num_actions + 1]     # [TB, 1]
    q = val + adv - jnp.mean(adv, axis=1, keepdims=True)
    out_ref[...] = q.astype(out_ref.dtype)


# ------------------------------ wrapper ------------------------------------ #

def _choose_batch_tile(B):
    # Modest tile: keeps double-buffered f32 activations well inside v7x's
    # 64 MiB VMEM while still amortizing per-step pipeline overhead.
    return B if B <= 512 else 512


def dqn_forward(x, params, num_actions, dueling):
    """x: [B, obs_dim] float32. Returns Q-values [B, num_actions] float32."""
    B, obs_dim = x.shape
    TB = _choose_batch_tile(B)
    grid = (pl.cdiv(B, TB),)

    if dueling:
        w1, b1 = params["w1f"], params["b1f"]
        w2, b2 = params["w2f"], params["b2f"]
        w3, b3 = params["w3f"], params["b3f"]
        out_cols = num_actions
        kernel = partial(_dueling_kernel, num_actions)
    else:
        w1, b1 = params["w1v"], params["b1v"]
        w2, b2 = params["w2v"], params["b2v"]
        w3, b3 = params["w3v"], params["b3v"]
        out_cols = 1                     # narrow value head; expand in wrapper
        kernel = _mlp3_kernel

    args = (x, w1, b1, w2, b2, w3, b3)

    def _resident_spec(a):
        # Full-array block, same block for every grid step -> stays in VMEM.
        return pl.BlockSpec(a.shape, lambda i: (0,) * a.ndim)

    in_specs = [pl.BlockSpec((TB, obs_dim), lambda i: (i, 0))]
    in_specs += [_resident_spec(a) for a in args[1:]]
    out_specs = pl.BlockSpec((TB, out_cols), lambda i: (i, 0))

    h1, h2o, h3o = w1.shape[1], w2.shape[1], w3.shape[1]
    flops = 2 * B * (obs_dim * h1 + h1 * h2o + h2o * h3o)
    bytes_accessed = 4 * (x.size + sum(a.size for a in args[1:]) + B * out_cols)

    out = pl.pallas_call(
        kernel,
        out_shape=jax.ShapeDtypeStruct((B, out_cols), jnp.float32),
        grid=grid,
        in_specs=in_specs,
        out_specs=out_specs,
        compiler_params=pltpu.CompilerParams(
            dimension_semantics=("parallel",)),
        cost_estimate=pl.CostEstimate(
            flops=flops, transcendentals=0, bytes_accessed=bytes_accessed),
    )(*args)

    if not dueling:
        # PyTorch: fc3_val(val).expand(B, num_actions)
        out = jnp.broadcast_to(out, (B, num_actions))
    return out


# --------------------------- parameter init --------------------------------- #

def _init_linear(key, fan_in, fan_out):
    """Mimics nn.Linear's U(-1/sqrt(fan_in), 1/sqrt(fan_in)) init."""
    kw, kb = jax.random.split(key)
    bound = 1.0 / math.sqrt(fan_in)
    w = jax.random.uniform(kw, (fan_in, fan_out), jnp.float32, -bound, bound)
    b = jax.random.uniform(kb, (1, fan_out), jnp.float32, -bound, bound)
    return w, b


def init_dqn_params(key, obs_dim, num_actions, q_fun_neurons, dueling):
    H = q_fun_neurons
    keys = jax.random.split(key, 6)
    p = {}
    p["w1v"], p["b1v"] = _init_linear(keys[0], obs_dim, H)
    p["w2v"], p["b2v"] = _init_linear(keys[1], H, H)
    p["w3v"], p["b3v"] = _init_linear(keys[2], H, 1)
    if dueling:
        p["w1a"], p["b1a"] = _init_linear(keys[3], obs_dim, H)
        p["w2a"], p["b2a"] = _init_linear(keys[4], H, H)
        p["w3a"], p["b3a"] = _init_linear(keys[5], H, num_actions)

        # ---- one-time fusion of the two streams into three matmuls ----
        p["w1f"] = jnp.concatenate([p["w1v"], p["w1a"]], axis=1)       # [obs, 2H]
        p["b1f"] = jnp.concatenate([p["b1v"], p["b1a"]], axis=1)       # [1, 2H]

        w2f = jnp.zeros((2 * H, 2 * H), jnp.float32)
        w2f = w2f.at[:H, :H].set(p["w2v"]).at[H:, H:].set(p["w2a"])
        p["w2f"] = w2f                                                 # [2H, 2H]
        p["b2f"] = jnp.concatenate([p["b2v"], p["b2a"]], axis=1)       # [1, 2H]

        # advantage in columns [0, A), value in column A
        w3f = jnp.zeros((2 * H, num_actions + 1), jnp.float32)
        w3f = w3f.at[H:, :num_actions].set(p["w3a"])
        w3f = w3f.at[:H, num_actions:].set(p["w3v"])
        p["w3f"] = w3f                                                 # [2H, A+1]
        p["b3f"] = jnp.concatenate([p["b3a"], p["b3v"]], axis=1)       # [1, A+1]
    return p


# -------------------------- pure-JAX reference ------------------------------ #

def dqn_reference(x, params, num_actions, dueling):
    def lin(h, w, b):
        return h @ w + b
    hv = jax.nn.relu(lin(x, params["w1v"], params["b1v"]))
    hv = jax.nn.relu(lin(hv, params["w2v"], params["b2v"]))
    val = lin(hv, params["w3v"], params["b3v"])                 # [B,1]
    val = jnp.broadcast_to(val, (x.shape[0], num_actions))
    if dueling:
        ha = jax.nn.relu(lin(x, params["w1a"], params["b1a"]))
        ha = jax.nn.relu(lin(ha, params["w2a"], params["b2a"]))
        adv = lin(ha, params["w3a"], params["b3a"])             # [B,A]
        val = val + adv - jnp.mean(adv, axis=1, keepdims=True)
    return val


# --------------------------------- main -------------------------------------- #

if __name__ == "__main__":
    B = 8            # batch
    OBS_DIM = 16     # obs_dim
    HID = 32         # q_fun_neurons
    A = 8            # num_actions

    key = jax.random.PRNGKey(0)
    kx, kp1, kp2 = jax.random.split(key, 3)
    x = jax.random.normal(kx, (B, OBS_DIM), jnp.float32)

    ok = True
    for dueling, kp in ((False, kp1), (True, kp2)):
        params = init_dqn_params(kp, OBS_DIM, A, HID, dueling)
        out = jax.block_until_ready(dqn_forward(x, params, A, dueling))
        ref = dqn_reference(x, params, A, dueling)
        if out.shape != (B, A):
            ok = False
        if not jnp.allclose(out, ref, atol=1e-4, rtol=1e-4):
            ok = False

    if ok:
        print("KERNEL_OK")
</pallas_src>

<mosaic_0001>
module attributes {stable_mosaic.version = 11 : i64} {
  func.func @_mlp3_kernel(%arg0: i32, %arg1: memref<8x16xf32, #tpu.memory_space<vmem>>, %arg2: memref<16x32xf32, #tpu.memory_space<vmem>>, %arg3: memref<1x32xf32, #tpu.memory_space<vmem>>, %arg4: memref<32x32xf32, #tpu.memory_space<vmem>>, %arg5: memref<1x32xf32, #tpu.memory_space<vmem>>, %arg6: memref<32x1xf32, #tpu.memory_space<vmem>>, %arg7: memref<1x1xf32, #tpu.memory_space<vmem>>, %arg8: memref<8x1xf32, #tpu.memory_space<vmem>>) attributes {dimension_semantics = [#tpu.dimension_semantics<parallel>], iteration_bounds = array<i64: 1>, scalar_prefetch = 0 : i64, scratch_operands = 0 : i64, tpu.core_type = #tpu.core_type<tc>, window_params = [{transform_indices = @transform_0, window_bounds = array<i64: 8, 16>}, {pipeline_mode = #tpu.pipeline_mode<synchronous>, transform_indices = @transform_1, window_bounds = array<i64: 16, 32>}, {pipeline_mode = #tpu.pipeline_mode<synchronous>, transform_indices = @transform_2, window_bounds = array<i64: 1, 32>}, {pipeline_mode = #tpu.pipeline_mode<synchronous>, transform_indices = @transform_3, window_bounds = array<i64: 32, 32>}, {pipeline_mode = #tpu.pipeline_mode<synchronous>, transform_indices = @transform_4, window_bounds = array<i64: 1, 32>}, {pipeline_mode = #tpu.pipeline_mode<synchronous>, transform_indices = @transform_5, window_bounds = array<i64: 32, 1>}, {pipeline_mode = #tpu.pipeline_mode<synchronous>, transform_indices = @transform_6, window_bounds = array<i64: 1, 1>}, {transform_indices = @transform_7, window_bounds = array<i64: 8, 1>}]} {
    %c0 = arith.constant 0 : index
    %c0_0 = arith.constant 0 : index
    %0 = vector.load %arg1[%c0, %c0_0] : memref<8x16xf32, #tpu.memory_space<vmem>>, vector<8x16xf32>
    %c0_1 = arith.constant 0 : index
    %c0_2 = arith.constant 0 : index
    %1 = vector.load %arg2[%c0_1, %c0_2] : memref<16x32xf32, #tpu.memory_space<vmem>>, vector<16x32xf32>
    %cst = arith.constant dense<0.000000e+00> : vector<8x32xf32>
    %2 = tpu.matmul %0, %1, %cst {dimension_numbers = #tpu.dot_dimension_numbers<[1], [0], [0], [1], [0, 0, 1, 1], [], []>} : vector<8x16xf32>, vector<16x32xf32>, vector<8x32xf32> -> vector<8x32xf32>
    %c0_3 = arith.constant 0 : index
    %c0_4 = arith.constant 0 : index
    %3 = vector.load %arg3[%c0_3, %c0_4] : memref<1x32xf32, #tpu.memory_space<vmem>>, vector<1x32xf32>
    %4 = vector.broadcast %3 : vector<1x32xf32> to vector<8x32xf32>
    %5 = arith.addf %2, %4 : vector<8x32xf32>
    %cst_5 = arith.constant 0.000000e+00 : f32
    %6 = vector.broadcast %cst_5 : f32 to vector<8x32xf32>
    %7 = arith.maximumf %5, %6 : vector<8x32xf32>
    %c0_6 = arith.constant 0 : index
    %c0_7 = arith.constant 0 : index
    %8 = vector.load %arg4[%c0_6, %c0_7] : memref<32x32xf32, #tpu.memory_space<vmem>>, vector<32x32xf32>
    %cst_8 = arith.constant dense<0.000000e+00> : vector<8x32xf32>
    %9 = tpu.matmul %7, %8, %cst_8 {dimension_numbers = #tpu.dot_dimension_numbers<[1], [0], [0], [1], [0, 0, 1, 1], [], []>} : vector<8x32xf32>, vector<32x32xf32>, vector<8x32xf32> -> vector<8x32xf32>
    %c0_9 = arith.constant 0 : index
    %c0_10 = arith.constant 0 : index
    %10 = vector.load %arg5[%c0_9, %c0_10] : memref<1x32xf32, #tpu.memory_space<vmem>>, vector<1x32xf32>
    %11 = vector.broadcast %10 : vector<1x32xf32> to vector<8x32xf32>
    %12 = arith.addf %9, %11 : vector<8x32xf32>
    %cst_11 = arith.constant 0.000000e+00 : f32
    %13 = vector.broadcast %cst_11 : f32 to vector<8x32xf32>
    %14 = arith.maximumf %12, %13 : vector<8x32xf32>
    %c0_12 = arith.constant 0 : index
    %c0_13 = arith.constant 0 : index
    %15 = vector.load %arg6[%c0_12, %c0_13] : memref<32x1xf32, #tpu.memory_space<vmem>>, vector<32x1xf32>
    %cst_14 = arith.constant dense<0.000000e+00> : vector<8x1xf32>
    %16 = tpu.matmul %14, %15, %cst_14 {dimension_numbers = #tpu.dot_dimension_numbers<[1], [0], [0], [1], [0, 0, 1, 1], [], []>} : vector<8x32xf32>, vector<32x1xf32>, vector<8x1xf32> -> vector<8x1xf32>
    %c0_15 = arith.constant 0 : index
    %c0_16 = arith.constant 0 : index
    %17 = vector.load %arg7[%c0_15, %c0_16] : memref<1x1xf32, #tpu.memory_space<vmem>>, vector<1x1xf32>
    %18 = vector.broadcast %17 : vector<1x1xf32> to vector<8x1xf32>
    %19 = arith.addf %16, %18 : vector<8x1xf32>
    %c0_17 = arith.constant 0 : index
    %c0_18 = arith.constant 0 : index
    %20 = vector.load %arg8[%c0_17, %c0_18] : memref<8x1xf32, #tpu.memory_space<vmem>>, vector<8x1xf32>
    tpu.vector_store %arg8[%c0_17, %c0_18], %19 {strides = array<i32>} : memref<8x1xf32, #tpu.memory_space<vmem>>, vector<8x1xf32>,
    return
  }
  func.func @transform_0(%arg0: i32) -> (i32, i32) {
    %c0_i32 = arith.constant 0 : i32
    %c0_i32_0 = arith.constant 0 : i32
    return %arg0, %c0_i32 : i32, i32
  }
  func.func @transform_1(%arg0: i32) -> (i32, i32) {
    %c0_i32 = arith.constant 0 : i32
    %c0_i32_0 = arith.constant 0 : i32
    %c0_i32_1 = arith.constant 0 : i32
    return %c0_i32, %c0_i32_0 : i32, i32
  }
  func.func @transform_2(%arg0: i32) -> (i32, i32) {
    %c0_i32 = arith.constant 0 : i32
    %c0_i32_0 = arith.constant 0 : i32
    %c0_i32_1 = arith.constant 0 : i32
    return %c0_i32, %c0_i32_0 : i32, i32
  }
  func.func @transform_3(%arg0: i32) -> (i32, i32) {
    %c0_i32 = arith.constant 0 : i32
    %c0_i32_0 = arith.constant 0 : i32
    %c0_i32_1 = arith.constant 0 : i32
    return %c0_i32, %c0_i32_0 : i32, i32
  }
  func.func @transform_4(%arg0: i32) -> (i32, i32) {
    %c0_i32 = arith.constant 0 : i32
    %c0_i32_0 = arith.constant 0 : i32
    %c0_i32_1 = arith.constant 0 : i32
    return %c0_i32, %c0_i32_0 : i32, i32
  }
  func.func @transform_5(%arg0: i32) -> (i32, i32) {
    %c0_i32 = arith.constant 0 : i32
    %c0_i32_0 = arith.constant 0 : i32
    %c0_i32_1 = arith.constant 0 : i32
    return %c0_i32, %c0_i32_0 : i32, i32
  }
  func.func @transform_6(%arg0: i32) -> (i32, i32) {
    %c0_i32 = arith.constant 0 : i32
    %c0_i32_0 = arith.constant 0 : i32
    %c0_i32_1 = arith.constant 0 : i32
    return %c0_i32, %c0_i32_0 : i32, i32
  }
  func.func @transform_7(%arg0: i32) -> (i32, i32) {
    %c0_i32 = arith.constant 0 : i32
    %c0_i32_0 = arith.constant 0 : i32
    return %arg0, %c0_i32 : i32, i32
  }
}

</mosaic_0001>

<llo_original>
// kernel: tpu_custom_call.1
$region0: #{tpu_custom_call.1}
  #allocation0 [shape = 'u32[]', space=smem, size = 0x4, offset = 0x4, fixed_abs, tag = 'smem constant byte address 0x4 - core index']
  #allocation1 [shape = 'u32[72,128]{1,0:T(1,128)}', space=vmem, size = 0x9000, scoped, tag = 'internal scratch']
  #allocation2 [shape = 'f32[1,1]{1,0:T(1,128)S(1)}', space=vmem, size = 0x200, scoped, tag = 'scoped memory for tpu_custom_call.1']
  %s0 = inlined_call_operand.hbm [shape: f32[8,16], index: 0, kind: input, shape index: {}]
  %s1 = inlined_call_operand.hbm [shape: f32[16,32], index: 1, kind: input, shape index: {}]
  %s2 = inlined_call_operand.vmem [shape: f32[1,32], index: 2, kind: input, shape index: {}]
  %s3 = inlined_call_operand.vmem [shape: f32[32,32], index: 3, kind: input, shape index: {}]
  %s4 = inlined_call_operand.vmem [shape: f32[1,32], index: 4, kind: input, shape index: {}]
  %s5 = inlined_call_operand.vmem [shape: f32[32,1], index: 5, kind: input, shape index: {}]
  %s6 = inlined_call_operand.<no memory space> [shape: f32[1,1], index: 6, kind: input, shape index: {}]
  %s7 = inlined_call_operand.vmem [shape: f32[8,1], index: 7, kind: output, shape index: {}]
  %s8 = sld [smem:[#allocation0]]
  $region46: #{tpu_custom_call.1} parent=0
    _
  %s10 = ssub.s32 1, %s8
  %s11 = scalar_select 0, %s10, %s8
  %v12 = vstv %s6
  %13 = vst [vmem:[#allocation2] sm:$0x1] %v12
  $region1: #{tpu_custom_call.1} parent=0
    #allocation3 [shape = 'u8[4096]{0}', space=vmem, size = 0x1000, scoped, tag = 'input window, operand 0, single buffered']
    #allocation4 [shape = 's32[1]{0}', space=sflag, size = 0x4, scoped, tag = 'scoped memory for tpu_custom_call.1']
    #allocation5 [shape = 'u8[8192]{0}', space=vmem, size = 0x2000, scoped, tag = 'input window, operand 1, single buffered']
    #allocation6 [shape = 's32[1]{0}', space=sflag, size = 0x4, scoped, tag = 'scoped memory for tpu_custom_call.1']
    %14 = vsyncpa [#allocation4], 0
    %15 = vsyncpa [#allocation6], 0
    // Predicated region
    $region2: #{tpu_custom_call.1} parent=1 // pred_check
      _
    $region3: #{tpu_custom_call.1} parent=1 // pred_check_branch
      %17 = sbr.rel (0) target = $region5
    $region4: #{tpu_custom_call.1} parent=1 // pred_region
      %19 = vsyncadd [#allocation4], 0
      %s21 = sshll.u32 %s0, 4
      %s22 = int_to_ptr.hbm [resolvable:$true] %s21
      %s23 = sshll.u32 [#allocation3], 4
      %s24 = int_to_ptr.vmem [resolvable:$true] %s23
      %26 = dma.hbm_to_vmem [thread:$0]  %s22, 128, %s24, [#allocation4]
    $region5: #{tpu_custom_call.1} parent=1 // pred_fallthru
      _
    // Predicated region
    $region6: #{tpu_custom_call.1} parent=1 // pred_check
      _
    $region7: #{tpu_custom_call.1} parent=1 // pred_check_branch
      %28 = sbr.rel (0) target = $region9
    $region8: #{tpu_custom_call.1} parent=1 // pred_region
      %30 = vsyncadd [#allocation6], 0
      %s31 = sshll.u32 %s1, 4
      %s32 = int_to_ptr.hbm [resolvable:$true] %s31
      %s33 = sshll.u32 [#allocation5], 4
      %s34 = int_to_ptr.vmem [resolvable:$true] %s33
      %39 = dma.hbm_to_vmem [thread:$0]  %s32, 256, %s34, [#allocation6], 128, 128, 8
    $region9: #{tpu_custom_call.1} parent=1 // pred_fallthru
      _
    // Predicated region
    $region10: #{tpu_custom_call.1} parent=1 // pred_check
      _
    $region11: #{tpu_custom_call.1} parent=1 // pred_check_branch
      %41 = sbr.rel (0) target = $region13
    $region12: #{tpu_custom_call.1} parent=1 // pred_region
      _
    $region13: #{tpu_custom_call.1} parent=1 // pred_fallthru
      _
    // Predicated region
    $region14: #{tpu_custom_call.1} parent=1 // pred_check
      _
    $region15: #{tpu_custom_call.1} parent=1 // pred_check_branch
      %43 = sbr.rel (0) target = $region17
    $region16: #{tpu_custom_call.1} parent=1 // pred_region
      _
    $region17: #{tpu_custom_call.1} parent=1 // pred_fallthru
      _
    // Predicated region
    $region18: #{tpu_custom_call.1} parent=1 // pred_check
      _
    $region19: #{tpu_custom_call.1} parent=1 // pred_check_branch
      %45 = sbr.rel (0) target = $region21
    $region20: #{tpu_custom_call.1} parent=1 // pred_region
      _
    $region21: #{tpu_custom_call.1} parent=1 // pred_fallthru
      _
    // Predicated region
    $region22: #{tpu_custom_call.1} parent=1 // pred_check
      _
    $region23: #{tpu_custom_call.1} parent=1 // pred_check_branch
      %47 = sbr.rel (0) target = $region25
    $region24: #{tpu_custom_call.1} parent=1 // pred_region
      _
    $region25: #{tpu_custom_call.1} parent=1 // pred_fallthru
      _
    // Predicated region
    $region26: #{tpu_custom_call.1} parent=1 // pred_check
      _
    $region27: #{tpu_custom_call.1} parent=1 // pred_check_branch
      %49 = sbr.rel (0) target = $region29
    $region28: #{tpu_custom_call.1} parent=1 // pred_region
      _
    $region29: #{tpu_custom_call.1} parent=1 // pred_fallthru
      _
    // Predicated region
    $region30: #{tpu_custom_call.1} parent=1 // pred_check
      _
    $region31: #{tpu_custom_call.1} parent=1 // pred_check_branch
      %51 = sbr.rel (0) target = $region33
    $region32: #{tpu_custom_call.1} parent=1 // pred_region
      %53 = dma.done [#allocation4], 128
    $region33: #{tpu_custom_call.1} parent=1 // pred_fallthru
      _
    // Predicated region
    $region34: #{tpu_custom_call.1} parent=1 // pred_check
      _
    $region35: #{tpu_custom_call.1} parent=1 // pred_check_branch
      %55 = sbr.rel (0) target = $region37
    $region36: #{tpu_custom_call.1} parent=1 // pred_region
      %57 = dma.done [#allocation6], 256
    $region37: #{tpu_custom_call.1} parent=1 // pred_fallthru
      _
    %v58 = vld [vmem:[#allocation3] sm:$0xff]
    %v59 = vld [vmem:[#allocation5] sm:$0xff]
    %v60 = vld [vmem:[#allocation5 + $0x8] sm:$0xff]
    %v61 = vld [vmem:[%s2] sm:$0x1]
    %v63 = vperm.slane %v61, 0
    %vm65 = vcmask 130048
    %v67 = vsel %vm65, %v58, 0
    %69 = vmatpush.msra.mxu0 0.0
    %70 = vmatpush.msra.mxu0 0.0
    %71 = vmatpush.msra.mxu0 0.0
    %72 = vmatpush.msra.mxu0 0.0
    %73 = vmatpush.msra.mxu0 0.0
    %74 = vmatpush.msra.mxu0 0.0
    %75 = vmatpush.msra.mxu0 0.0
    %76 = vmatpush.msra.mxu0 0.0
    %77 = vmatpush.msra.mxu0 0.0
    %78 = vmatpush.msra.mxu0 0.0
    %79 = vmatpush.msra.mxu0 0.0
    %80 = vmatpush.msra.mxu0 0.0
    %81 = vmatpush.msra.mxu0 0.0
    %82 = vmatpush.msra.mxu0 0.0
    %83 = vmatpush.msra.mxu0 %v60
    %84 = vmatpush.msra.mxu0 %v59
    %85 = vmatmul.f32.gmra.mxu0 %v67
    %v86 = vpop.f32.mrf.mxu0
    %v87 = vadd.f32 %v63, %v86
    %88 = vdwg.mxu0
    %v89 = vmax.f32 %v87, 0.0
    %v90 = vld [vmem:[%s3] sm:$0xff]
    %v91 = vld [vmem:[%s3 + $0x8] sm:$0xff]
    %v92 = vld [vmem:[%s3 + $0x10] sm:$0xff]
    %v93 = vld [vmem:[%s3 + $0x18] sm:$0xff]
    %v94 = vld [vmem:[%s4] sm:$0x1]
    %v96 = vperm.slane %v94, 0
    %vm98 = vcmask 261120
    %v100 = vsel %vm98, %v89, 0
    %102 = vmatpush.msra.mxu0 0.0
    %103 = vmatpush.msra.mxu0 0.0
    %104 = vmatpush.msra.mxu0 0.0
    %105 = vmatpush.msra.mxu0 0.0
    %106 = vmatpush.msra.mxu0 0.0
    %107 = vmatpush.msra.mxu0 0.0
    %108 = vmatpush.msra.mxu0 0.0
    %109 = vmatpush.msra.mxu0 0.0
    %110 = vmatpush.msra.mxu0 0.0
    %111 = vmatpush.msra.mxu0 0.0
    %112 = vmatpush.msra.mxu0 0.0
    %113 = vmatpush.msra.mxu0 0.0
    %114 = vmatpush.msra.mxu0 %v93
    %115 = vmatpush.msra.mxu0 %v92
    %116 = vmatpush.msra.mxu0 %v91
    %117 = vmatpush.msra.mxu0 %v90
    %118 = vmatmul.f32.gmra.mxu0 %v100
    %v119 = vpop.f32.mrf.mxu0
    %v120 = vadd.f32 %v96, %v119
    %121 = vdwg.mxu0
    %v122 = vmax.f32 %v120, 0.0
    %v123 = vld [vmem:[%s5] sm:$0xff]
    %v124 = vld [vmem:[%s5 + $0x8] sm:$0xff]
    %v125 = vld [vmem:[%s5 + $0x10] sm:$0xff]
    %v126 = vld [vmem:[%s5 + $0x18] sm:$0xff]
    %v127 = vld [vmem:[#allocation2] sm:$0x1]
    %v129 = vperm.slane %v127, 0
    %v132 = vsel %vm98, %v122, 0
    %134 = vmatpush.msra.mxu0 0.0
    %135 = vmatpush.msra.mxu0 0.0
    %136 = vmatpush.msra.mxu0 0.0
    %137 = vmatpush.msra.mxu0 0.0
    %138 = vmatpush.msra.mxu0 0.0
    %139 = vmatpush.msra.mxu0 0.0
    %140 = vmatpush.msra.mxu0 0.0
    %141 = vmatpush.msra.mxu0 0.0
    %142 = vmatpush.msra.mxu0 0.0
    %143 = vmatpush.msra.mxu0 0.0
    %144 = vmatpush.msra.mxu0 0.0
    %145 = vmatpush.msra.mxu0 0.0
    %146 = vmatpush.msra.mxu0 %v126
    %147 = vmatpush.msra.mxu0 %v125
    %148 = vmatpush.msra.mxu0 %v124
    %149 = vmatpush.msra.mxu0 %v123
    %150 = vmatmul.f32.gmra.mxu0 %v132
    %v151 = vpop.f32.mrf.mxu0
    %v152 = vadd.f32 %v129, %v151
    %153 = vdwg.mxu0
    %vm154 = vcmask 7168
    %155 = vst.msk [vmem:[%s7] sm:$0xff] %vm154, %v152
    // Predicated region
    $region38: #{tpu_custom_call.1} parent=1 // pred_check
      _
    $region39: #{tpu_custom_call.1} parent=1 // pred_check_branch
      %157 = sbr.rel (0) target = $region41
    $region40: #{tpu_custom_call.1} parent=1 // pred_region
      _
    $region41: #{tpu_custom_call.1} parent=1 // pred_fallthru
      _
    // Predicated region
    $region42: #{tpu_custom_call.1} parent=1 // pred_check
      _
    $region43: #{tpu_custom_call.1} parent=1 // pred_check_branch
      %159 = sbr.rel (0) target = $region45
    $region44: #{tpu_custom_call.1} parent=1 // pred_region
      _
    $region45: #{tpu_custom_call.1} parent=1 // pred_fallthru
      _
    %160 = vsyncpa [#allocation4], 1
    %161 = vsyncpa [#allocation6], 1

</llo_original>
